<compile_context>
chip_gen: v5e
topology: v5e:2x2
jax: 0.10.0
libtpu: 0.0.40
codegen_flags: <defaults>
</compile_context>

<pallas_src>
import jax
import jax.numpy as jnp
from jax import lax
from jax.experimental import pallas as pl
from jax.experimental.pallas import tpu as pltpu


def _round_up(x: int, m: int) -> int:
    return ((x + m - 1) // m) * m


def _vmem_capacity_bytes() -> int:
    """Per-TensorCore VMEM capacity; conservative 64 MiB (v7x) fallback."""
    try:
        return int(pltpu.get_tpu_info().vmem_capacity_bytes)
    except Exception:
        return 64 * 2**20


def _pick_tq(N: int, fixed_bytes: int, per_tq_bytes: int, budget_bytes: int) -> int:
    """Largest query tile TQ (multiple of 128 dividing N) whose full per-step VMEM
    footprint fits the budget; falls back to full N when N is not 128-aligned."""
    if N % 128 != 0:
        return N
    best, t = 128, 128
    while t <= N:
        if N % t == 0 and fixed_bytes + per_tq_bytes * t <= budget_bytes:
            best = t
        t += 128
    return best


def _make_kernel(C, C8, C8p, Rp, TQ, compute_dtype, with_attn, use_qt):
    k_off, v_off = C8p, 2 * C8p
    cd = jnp.dtype(compute_dtype)

    def kernel(x_ref, w_ref, b_ref, gamma_ref, *rest):
        if with_attn:
            out_ref, attn_ref, qkv_ref, qt_ref = rest
        else:
            out_ref, qkv_ref, qt_ref = rest

        jq = pl.program_id(1)

        # Fused q/k/v projection for the whole batch element: computed once per batch
        # (q-tile 0), cached in VMEM scratch, reused by every query tile. q is also
        # cached transposed so the per-tile energy matmul is in standard MXU form.
        @pl.when(jq == 0)
        def _():
            xw = x_ref[...].astype(compute_dtype)                # (C, N)
            w = w_ref[...].astype(compute_dtype)                 # (Rp, C)
            proj = lax.dot_general(w, xw, (((1,), (0,)), ((), ())),
                                   preferred_element_type=jnp.float32)   # (Rp, N)
            proj = proj + b_ref[...]                             # (Rp, 1) broadcast
            qkv_ref[...] = proj.astype(qkv_ref.dtype)
            if use_qt:
                # One f32 transpose per batch, amortized over all query tiles.
                qt_ref[...] = jnp.transpose(proj[0:C8p, :]).astype(qt_ref.dtype)

        q_start = pl.multiple_of(jq * TQ, TQ)

        # Padded, sublane-aligned row slices (pad rows are exactly zero -> results unchanged).
        k = qkv_ref[pl.ds(k_off, C8p), :]                        # (C8p, N) compute dtype
        v = qkv_ref[pl.ds(v_off, C), :]                          # (C,   N) compute dtype

        if use_qt:
            q_t = qt_ref[pl.ds(q_start, TQ), :]                  # (TQ, C8p) compute dtype
            # energy[i, j] = sum_c q[c, i] k[c, j]  -- MXU-native (M,K)x(K,N) form.
            energy = lax.dot_general(q_t, k, (((1,), (0,)), ((), ())),
                                     preferred_element_type=jnp.float32)  # (TQ, N)
        else:
            # Fallback (N not 128-aligned): original lhs-transposed form, f32 operands.
            q = qkv_ref[pl.ds(0, C8p), pl.ds(q_start, TQ)].astype(jnp.float32)
            energy = lax.dot_general(q, k.astype(jnp.float32),
                                     (((0,), (0,)), ((), ())),
                                     preferred_element_type=jnp.float32)  # (TQ, N)

        # Softmax over the key axis, in f32 (attention is an exported output; v5e has no
        # bf16 VPU/EUP). Denominator via approximate reciprocal (EUP slot).
        m = jnp.max(energy, axis=-1, keepdims=True)
        e = jnp.exp(energy - m)
        s = jnp.sum(e, axis=-1, keepdims=True)
        attn = e * pl.reciprocal(s, approx=True)                 # (TQ, N) f32
        attn_c = attn.astype(compute_dtype)                      # operand for the o matmul

        if with_attn:
            if jnp.dtype(attn_ref.dtype) == cd:
                attn_ref[...] = attn_c                           # reuse the single cast
            else:
                attn_ref[...] = attn.astype(attn_ref.dtype)

        # o[c, i] = sum_j v[c, j] * attn[i, j]; both operands contract on their last
        # (lane) dim (native rhs-transposed flash form), output (C, TQ) lane-dense.
        o = lax.dot_general(v, attn_c, (((1,), (1,)), ((), ())),
                            preferred_element_type=jnp.float32)  # (C, TQ) f32

        x_tile = x_ref[:, pl.ds(q_start, TQ)]                    # (C, TQ) f32
        out_ref[...] = (gamma_ref[0] * o + x_tile).astype(out_ref.dtype)

    return kernel


def self_attention_pallas(x_nchw, wq, bq, wk, bk, wv, bv, gamma, *,
                          tq=None, compute_dtype=jnp.bfloat16,
                          return_attention=True, attn_dtype=jnp.bfloat16):
    """SAGAN SelfAttention forward.

    x_nchw : (B, C, W, H) float32
    wq, wk : (C//8, C) 1x1-conv weights (PyTorch (out, in) layout, kernel dims dropped)
    wv     : (C, C);  bq, bk: (C//8,);  bv: (C,);  gamma: (1,)
    Returns (out (B,C,W,H), attention (B,N,N)), or just out if return_attention=False.
    """
    B, C, W, H = x_nchw.shape
    N = W * H
    C8 = wq.shape[0]
    assert wq.shape == (C8, C) and wk.shape == (C8, C) and wv.shape == (C, C)

    cbytes = jnp.dtype(compute_dtype).itemsize
    sub = 16 if cbytes == 2 else 8            # sublane packing (bf16: 16, f32: 8)
    C8p = _round_up(C8, sub)
    Rp = 2 * C8p + C

    # Fuse Wq/Wk/Wv (+ biases) into one weight; each segment starts on a packed-sublane
    # boundary so in-kernel row slices of the cached projection stay aligned.
    w_qkv = jnp.zeros((Rp, C), jnp.float32)
    w_qkv = w_qkv.at[0:C8].set(wq.astype(jnp.float32))
    w_qkv = w_qkv.at[C8p:C8p + C8].set(wk.astype(jnp.float32))
    w_qkv = w_qkv.at[2 * C8p:2 * C8p + C].set(wv.astype(jnp.float32))
    b_qkv = jnp.zeros((Rp, 1), jnp.float32)
    b_qkv = b_qkv.at[0:C8, 0].set(bq.astype(jnp.float32))
    b_qkv = b_qkv.at[C8p:C8p + C8, 0].set(bk.astype(jnp.float32))
    b_qkv = b_qkv.at[2 * C8p:2 * C8p + C, 0].set(bv.astype(jnp.float32))

    x_bcn = x_nchw.reshape(B, C, N)                      # NCHW -> (B, C, N): pure reshape
    gamma = jnp.asarray(gamma, jnp.float32).reshape((1,))

    # --- Generation-aware VMEM budgeting (full per-step footprint) ---
    abytes = jnp.dtype(attn_dtype).itemsize if return_attention else 0
    vmem_cap = _vmem_capacity_bytes()
    fixed_bytes = (2 * C * N * 4               # x block (double-buffered across batch)
                   + Rp * N * cbytes           # cached q/k/v projection scratch
                   + N * C8p * cbytes          # cached transposed-q scratch
                   + (Rp * C + Rp) * 4)        # fused weight + bias (single VMEM copy)
    per_tq_bytes = (2 * C * 4                  # out tile (double-buffered)
                    + 2 * N * abytes           # attention tile (double-buffered)
                    + 4 * N * 4                # energy / exp / softmax f32 temporaries
                    + N * cbytes               # attn cast to compute dtype
                    + C * 4)                   # o accumulator
    TQ = _pick_tq(N, fixed_bytes, per_tq_bytes, int(0.8 * vmem_cap)) if tq is None else tq
    assert N % TQ == 0 and (TQ == N or TQ % 128 == 0), (N, TQ)
    NQ = N // TQ
    vmem_limit = int(0.9 * vmem_cap)
    use_qt = (N % 128 == 0)                    # standard-form energy matmul path

    in_specs = [
        pl.BlockSpec((None, C, N), lambda b, j: (b, 0, 0)),   # x: full row, resident over q tiles
        # Constant fused weight/bias: whole-array VMEM residence (one copy, no per-step DMA,
        # no double-buffering) -- saves VMEM on v7x's 64 MiB.
        pl.BlockSpec(memory_space=pltpu.MemorySpace.VMEM),     # fused W_qkv
        pl.BlockSpec(memory_space=pltpu.MemorySpace.VMEM),     # fused bias
        pl.BlockSpec(memory_space=pltpu.MemorySpace.SMEM),     # gamma (scalar path)
    ]
    out_spec_o = pl.BlockSpec((None, C, TQ), lambda b, j: (b, 0, j))
    if return_attention:
        out_specs = (out_spec_o,
                     pl.BlockSpec((None, TQ, N), lambda b, j: (b, j, 0)))
        out_shape = (jax.ShapeDtypeStruct((B, C, N), x_bcn.dtype),
                     jax.ShapeDtypeStruct((B, N, N), attn_dtype))
    else:
        out_specs = out_spec_o
        out_shape = jax.ShapeDtypeStruct((B, C, N), x_bcn.dtype)

    kernel = _make_kernel(C, C8, C8p, Rp, TQ, compute_dtype, return_attention, use_qt)

    grid_spec = pltpu.PrefetchScalarGridSpec(
        num_scalar_prefetch=0,
        grid=(B, NQ),
        in_specs=in_specs,
        out_specs=out_specs,
        scratch_shapes=[pltpu.VMEM((Rp, N), compute_dtype),    # cached q/k/v projection
                        pltpu.VMEM((N, C8p), compute_dtype)],  # cached transposed q
    )

    result = pl.pallas_call(
        kernel,
        grid_spec=grid_spec,
        out_shape=out_shape,
        compiler_params=pltpu.CompilerParams(
            # Batch axis may shard across TensorCores; the query-tile axis must stay
            # in-order because it reuses the per-batch cached projection scratch.
            dimension_semantics=("parallel", "arbitrary"),
            vmem_limit_bytes=vmem_limit,
        ),
    )(x_bcn, w_qkv, b_qkv, gamma)

    if return_attention:
        out_bcn, attn = result
        return out_bcn.reshape(B, C, W, H), attn
    return result.reshape(B, C, W, H)


def _reference(x_nchw, wq, bq, wk, bk, wv, bv, gamma):
    B, C, W, H = x_nchw.shape
    N = W * H
    x = x_nchw.reshape(B, C, N)
    q = jnp.einsum("oc,bcn->bon", wq, x) + bq[None, :, None]
    k = jnp.einsum("oc,bcn->bon", wk, x) + bk[None, :, None]
    v = jnp.einsum("oc,bcn->bon", wv, x) + bv[None, :, None]
    energy = jnp.einsum("bci,bcj->bij", q, k)
    attn = jax.nn.softmax(energy, axis=-1)
    o = jnp.einsum("bcj,bij->bci", v, attn)
    out = gamma[0] * o + x
    return out.reshape(B, C, W, H), attn


if __name__ == "__main__":
    B, C, W, H = 2, 32, 16, 16      # in_dim must be >= 8 (C // 8 projections)
    N = W * H                        # 256
    C8 = C // 8                      # 4

    key = jax.random.PRNGKey(0)
    kx, kq, kk, kv, kbq, kbk, kbv = jax.random.split(key, 7)
    x = jax.random.normal(kx, (B, C, W, H), dtype=jnp.float32)
    # Conv2d(1x1) weights in PyTorch (out, in) layout (kernel dims dropped).
    wq = jax.random.normal(kq, (C8, C), dtype=jnp.float32) * 0.1
    wk = jax.random.normal(kk, (C8, C), dtype=jnp.float32) * 0.1
    wv = jax.random.normal(kv, (C, C), dtype=jnp.float32) * 0.1
    bq = jax.random.normal(kbq, (C8,), dtype=jnp.float32) * 0.1
    bk = jax.random.normal(kbk, (C8,), dtype=jnp.float32) * 0.1
    bv = jax.random.normal(kbv, (C,), dtype=jnp.float32) * 0.1
    gamma0 = jnp.zeros((1,), dtype=jnp.float32)          # module's init (gamma = 0)
    gamma_nz = jnp.full((1,), 0.7, dtype=jnp.float32)    # exercise the residual scale

    out_ref, attn_ref = _reference(x, wq, bq, wk, bk, wv, bv, gamma_nz)

    # f32 path, query axis tiled (TQ=128 -> grid (B, 2)), f32 attention, tight tolerance.
    out, attn = self_attention_pallas(x, wq, bq, wk, bk, wv, bv, gamma_nz, tq=128,
                                      compute_dtype=jnp.float32, attn_dtype=jnp.float32)
    out, attn = jax.block_until_ready((out, attn))
    assert out.shape == (B, C, W, H) and attn.shape == (B, N, N)
    assert jnp.allclose(out, out_ref, atol=1e-3, rtol=1e-3)
    assert jnp.allclose(attn, attn_ref, atol=1e-3, rtol=1e-3)

    # Default (bf16 MXU operands, f32 accumulation, bf16 attention writeback, auto TQ).
    out_bf, attn_bf = self_attention_pallas(x, wq, bq, wk, bk, wv, bv, gamma_nz)
    out_bf, attn_bf = jax.block_until_ready((out_bf, attn_bf))
    assert jnp.allclose(out_bf, out_ref, atol=3e-2, rtol=3e-2)
    assert jnp.allclose(attn_bf.astype(jnp.float32), attn_ref, atol=2e-2, rtol=2e-2)

    # gamma = 0 (module init): out must equal x (residual passthrough, f32 add path).
    out0, _ = self_attention_pallas(x, wq, bq, wk, bk, wv, bv, gamma0)
    out0 = jax.block_until_ready(out0)
    assert jnp.allclose(out0, x, atol=1e-5, rtol=1e-5)

    # out-only path: skips the O(N^2) attention writeback entirely.
    out_only = self_attention_pallas(x, wq, bq, wk, bk, wv, bv, gamma_nz,
                                     tq=128, return_attention=False)
    out_only = jax.block_until_ready(out_only)
    assert jnp.allclose(out_only, out_ref, atol=3e-2, rtol=3e-2)

    print("KERNEL_OK")
</pallas_src>

<mosaic_0001>
module attributes {stable_mosaic.version = 11 : i64} {
  func.func @kernel(%arg0: i32, %arg1: i32, %arg2: memref<1x32x256xf32, #tpu.memory_space<vmem>>, %arg3: memref<48x32xf32, #tpu.memory_space<vmem>>, %arg4: memref<48x1xf32, #tpu.memory_space<vmem>>, %arg5: memref<1xf32, #tpu.memory_space<smem>>, %arg6: memref<1x32x128xf32, #tpu.memory_space<vmem>>, %arg7: memref<1x128x256xf32, #tpu.memory_space<vmem>>, %arg8: memref<48x256xf32, #tpu.memory_space<vmem>>, %arg9: memref<256x8xf32, #tpu.memory_space<vmem>>) attributes {dimension_semantics = [#tpu.dimension_semantics<parallel>, #tpu.dimension_semantics<arbitrary>], iteration_bounds = array<i64: 2, 2>, scalar_prefetch = 0 : i64, scratch_operands = 2 : i64, tpu.core_type = #tpu.core_type<tc>, window_params = [{transform_indices = @transform_0, window_bounds = array<i64: 1, 32, 256>}, {pipeline_mode = #tpu.pipeline_mode<synchronous>, transform_indices = @transform_1, window_bounds = array<i64: 48, 32>}, {pipeline_mode = #tpu.pipeline_mode<synchronous>, transform_indices = @transform_2, window_bounds = array<i64: 48, 1>}, {transform_indices = @transform_3, window_bounds = array<i64: 1>}, {transform_indices = @transform_4, window_bounds = array<i64: 1, 32, 128>}, {transform_indices = @transform_5, window_bounds = array<i64: 1, 128, 256>}]} {
    %c0_i32 = arith.constant 0 : i32
    %0 = arith.cmpi eq, %arg1, %c0_i32 : i32
    %1 = arith.extui %0 : i1 to i32
    %c0_i32_0 = arith.constant 0 : i32
    %2 = arith.cmpi ne, %1, %c0_i32_0 : i32
    scf.if %2 {
      %c0_15 = arith.constant 0 : index
      %c0_16 = arith.constant 0 : index
      %c0_17 = arith.constant 0 : index
      %34 = vector.load %arg2[%c0_15, %c0_16, %c0_17] : memref<1x32x256xf32, #tpu.memory_space<vmem>>, vector<1x32x256xf32>
      %35 = vector.shape_cast %34 : vector<1x32x256xf32> to vector<32x256xf32>
      %c0_18 = arith.constant 0 : index
      %c0_19 = arith.constant 0 : index
      %36 = vector.load %arg3[%c0_18, %c0_19] : memref<48x32xf32, #tpu.memory_space<vmem>>, vector<48x32xf32>
      %cst_20 = arith.constant dense<0.000000e+00> : vector<48x256xf32>
      %37 = tpu.matmul %36, %35, %cst_20 {dimension_numbers = #tpu.dot_dimension_numbers<[1], [0], [0], [1], [0, 0, 1, 1], [], []>} : vector<48x32xf32>, vector<32x256xf32>, vector<48x256xf32> -> vector<48x256xf32>
      %c0_21 = arith.constant 0 : index
      %c0_22 = arith.constant 0 : index
      %38 = vector.load %arg4[%c0_21, %c0_22] : memref<48x1xf32, #tpu.memory_space<vmem>>, vector<48x1xf32>
      %39 = vector.broadcast %38 : vector<48x1xf32> to vector<48x256xf32>
      %40 = arith.addf %37, %39 : vector<48x256xf32>
      %c0_23 = arith.constant 0 : index
      %c0_24 = arith.constant 0 : index
      %41 = vector.load %arg8[%c0_23, %c0_24] : memref<48x256xf32, #tpu.memory_space<vmem>>, vector<48x256xf32>
      tpu.vector_store %arg8[%c0_23, %c0_24], %40 {strides = array<i32>} : memref<48x256xf32, #tpu.memory_space<vmem>>, vector<48x256xf32>,
      %42 = vector.extract_strided_slice %40 {offsets = [0, 0], sizes = [8, 256], strides = [1, 1]} : vector<48x256xf32> to vector<8x256xf32>
      %43 = tpu.transpose %42, [1, 0] : vector<8x256xf32> -> vector<256x8xf32>
      %c0_25 = arith.constant 0 : index
      %c0_26 = arith.constant 0 : index
      %44 = vector.load %arg9[%c0_25, %c0_26] : memref<256x8xf32, #tpu.memory_space<vmem>>, vector<256x8xf32>
      tpu.vector_store %arg9[%c0_25, %c0_26], %43 {strides = array<i32>} : memref<256x8xf32, #tpu.memory_space<vmem>>, vector<256x8xf32>,
    } else {
    }
    %c128_i32 = arith.constant 128 : i32
    %3 = arith.muli %arg1, %c128_i32 : i32
    %4 = tpu.assume_multiple %3, 128 : i32
    %c8 = arith.constant 8 : index
    %c0 = arith.constant 0 : index
    %5 = vector.load %arg8[%c8, %c0] : memref<48x256xf32, #tpu.memory_space<vmem>>, vector<8x256xf32>
    %c16 = arith.constant 16 : index
    %c0_1 = arith.constant 0 : index
    %6 = vector.load %arg8[%c16, %c0_1] : memref<48x256xf32, #tpu.memory_space<vmem>>, vector<32x256xf32>
    %7 = arith.index_cast %4 : i32 to index
    %c0_2 = arith.constant 0 : index
    %8 = vector.load %arg9[%7, %c0_2] : memref<256x8xf32, #tpu.memory_space<vmem>>, vector<128x8xf32>
    %cst = arith.constant dense<0.000000e+00> : vector<128x256xf32>
    %9 = tpu.matmul %8, %5, %cst {dimension_numbers = #tpu.dot_dimension_numbers<[1], [0], [0], [1], [0, 0, 1, 1], [], []>} : vector<128x8xf32>, vector<8x256xf32>, vector<128x256xf32> -> vector<128x256xf32>
    %cst_3 = arith.constant dense<0xFF800000> : vector<128xf32>
    %10 = vector.multi_reduction <maximumf>, %9, %cst_3 [1] : vector<128x256xf32> to vector<128xf32>
    %11 = vector.shape_cast %10 : vector<128xf32> to vector<128x1xf32>
    %12 = vector.broadcast %11 : vector<128x1xf32> to vector<128x256xf32>
    %13 = arith.subf %9, %12 : vector<128x256xf32>
    %14 = math.exp %13 : vector<128x256xf32>
    %cst_4 = arith.constant dense<0.000000e+00> : vector<128xf32>
    %15 = vector.multi_reduction <add>, %14, %cst_4 [1] : vector<128x256xf32> to vector<128xf32>
    %16 = vector.shape_cast %15 : vector<128xf32> to vector<128x1xf32>
    %17 = tpu.reciprocal %16 {approx = true} : vector<128x1xf32> -> vector<128x1xf32>
    %18 = vector.broadcast %17 : vector<128x1xf32> to vector<128x256xf32>
    %19 = arith.mulf %14, %18 : vector<128x256xf32>
    %c0_5 = arith.constant 0 : index
    %c0_6 = arith.constant 0 : index
    %c0_7 = arith.constant 0 : index
    %20 = vector.load %arg7[%c0_5, %c0_6, %c0_7] : memref<1x128x256xf32, #tpu.memory_space<vmem>>, vector<1x128x256xf32>
    %21 = vector.shape_cast %20 : vector<1x128x256xf32> to vector<128x256xf32>
    %22 = vector.shape_cast %19 : vector<128x256xf32> to vector<1x128x256xf32>
    tpu.vector_store %arg7[%c0_5, %c0_6, %c0_7], %22 {strides = array<i32>} : memref<1x128x256xf32, #tpu.memory_space<vmem>>, vector<1x128x256xf32>,
    %cst_8 = arith.constant dense<0.000000e+00> : vector<32x128xf32>
    %23 = tpu.matmul %6, %19, %cst_8 {dimension_numbers = #tpu.dot_dimension_numbers<[1], [1], [0], [0], [0, 0, 1, 0], [], []>} : vector<32x256xf32>, vector<128x256xf32>, vector<32x128xf32> -> vector<32x128xf32>
    %c0_9 = arith.constant 0 : index
    %c0_10 = arith.constant 0 : index
    %24 = arith.index_cast %4 : i32 to index
    %25 = vector.load %arg2[%c0_9, %c0_10, %24] : memref<1x32x256xf32, #tpu.memory_space<vmem>>, vector<1x32x128xf32>
    %26 = vector.shape_cast %25 : vector<1x32x128xf32> to vector<32x128xf32>
    %c0_11 = arith.constant 0 : index
    %27 = memref.load %arg5[%c0_11] : memref<1xf32, #tpu.memory_space<smem>>
    %28 = vector.broadcast %27 : f32 to vector<32x128xf32>
    %29 = arith.mulf %28, %23 : vector<32x128xf32>
    %30 = arith.addf %29, %26 : vector<32x128xf32>
    %c0_12 = arith.constant 0 : index
    %c0_13 = arith.constant 0 : index
    %c0_14 = arith.constant 0 : index
    %31 = vector.load %arg6[%c0_12, %c0_13, %c0_14] : memref<1x32x128xf32, #tpu.memory_space<vmem>>, vector<1x32x128xf32>
    %32 = vector.shape_cast %31 : vector<1x32x128xf32> to vector<32x128xf32>
    %33 = vector.shape_cast %30 : vector<32x128xf32> to vector<1x32x128xf32>
    tpu.vector_store %arg6[%c0_12, %c0_13, %c0_14], %33 {strides = array<i32>} : memref<1x32x128xf32, #tpu.memory_space<vmem>>, vector<1x32x128xf32>,
    return
  }
  func.func @transform_0(%arg0: i32, %arg1: i32) -> (i32, i32, i32) {
    %c0_i32 = arith.constant 0 : i32
    %c0_i32_0 = arith.constant 0 : i32
    %c0_i32_1 = arith.constant 0 : i32
    return %arg0, %c0_i32, %c0_i32_0 : i32, i32, i32
  }
  func.func @transform_1(%arg0: i32, %arg1: i32) -> (i32, i32) {
    %c0_i32 = arith.constant 0 : i32
    %c0_i32_0 = arith.constant 0 : i32
    %c0_i32_1 = arith.constant 0 : i32
    return %c0_i32, %c0_i32_0 : i32, i32
  }
  func.func @transform_2(%arg0: i32, %arg1: i32) -> (i32, i32) {
    %c0_i32 = arith.constant 0 : i32
    %c0_i32_0 = arith.constant 0 : i32
    %c0_i32_1 = arith.constant 0 : i32
    return %c0_i32, %c0_i32_0 : i32, i32
  }
  func.func @transform_3(%arg0: i32, %arg1: i32) -> i32 {
    %c0_i32 = arith.constant 0 : i32
    %c0_i32_0 = arith.constant 0 : i32
    return %c0_i32 : i32
  }
  func.func @transform_4(%arg0: i32, %arg1: i32) -> (i32, i32, i32) {
    %c0_i32 = arith.constant 0 : i32
    %c0_i32_0 = arith.constant 0 : i32
    return %arg0, %c0_i32, %arg1 : i32, i32, i32
  }
  func.func @transform_5(%arg0: i32, %arg1: i32) -> (i32, i32, i32) {
    %c0_i32 = arith.constant 0 : i32
    %c0_i32_0 = arith.constant 0 : i32
    return %arg0, %arg1, %c0_i32 : i32, i32, i32
  }
}

</mosaic_0001>

<llo_original>
// kernel: tpu_custom_call.1
$region0: #{tpu_custom_call.1}
  #allocation0 [shape = 'u32[]', space=smem, size = 0x4, offset = 0x4, fixed_abs, tag = 'smem constant byte address 0x4 - core index']
  #allocation1 [shape = 'u32[72,128]{1,0:T(1,128)}', space=vmem, size = 0x9000, scoped, tag = 'internal scratch']
  #allocation2 [shape = 'f32[48,256]{1,0:T(8,128)}', space=vmem, size = 0xc000, scoped, tag = 'scratch operand']
  #allocation3 [shape = 'f32[256,8]{1,0:T(8,128)}', space=vmem, size = 0x20000, scoped, tag = 'scratch operand']
  #allocation4 [shape = 'f32[1]{0:T(128)S(6)}', space=smem, size = 0x200, scoped, tag = 'scoped memory for tpu_custom_call.1']
  %s0 = inlined_call_operand.vmem [shape: f32[2,32,256], index: 0, kind: input, shape index: {}]
  %s1 = inlined_call_operand.vmem [shape: f32[48,32], index: 1, kind: input, shape index: {}]
  %s2 = inlined_call_operand.vmem [shape: f32[48,1], index: 2, kind: input, shape index: {}]
  %s3 = inlined_call_operand.<no memory space> [shape: f32[1], index: 3, kind: input, shape index: {}]
  %s4 = inlined_call_operand.hbm [shape: f32[2,32,256], index: 4, kind: output, shape index: {0}]
  %s5 = inlined_call_operand.hbm [shape: f32[2,256,256], index: 5, kind: output, shape index: {1}]
  %6 = xla_tuple %s4, %s5
  %s7 = sld [smem:[#allocation0]]
  $region61: #{tpu_custom_call.1} parent=0
    _
  %s9 = ssub.s32 1, %s7
  %s10 = scalar_select 0, %s9, %s7
  %11 = sst [smem:[#allocation4]] %s3
  $region1: #{tpu_custom_call.1} parent=0
    #allocation5 [shape = 'u8[32768]{0}', space=vmem, size = 0x8000, scoped, tag = 'output window, operand 0']
    #allocation6 [shape = 's32[2]{0}', space=sflag, size = 0x8, scoped, tag = 'scoped memory for tpu_custom_call.1']
    #allocation7 [shape = 'u8[262144]{0}', space=vmem, size = 0x40000, scoped, tag = 'output window, operand 1']
    #allocation8 [shape = 's32[2]{0}', space=sflag, size = 0x8, scoped, tag = 'scoped memory for tpu_custom_call.1']
    %12 = vsyncpa [#allocation6], 0
    %s13 = scalar_lea.sflag [#allocation6], 1
    %14 = vsyncpa %s13, 0
    %15 = vsyncpa [#allocation8], 0
    %s16 = scalar_lea.sflag [#allocation8], 1
    %17 = vsyncpa %s16, 0
    loop: start=0, step=1, limit=6
    $region2: #{tpu_custom_call.1} parent=1 // loop_pre_header
      _
    $region3: #{tpu_custom_call.1} parent=1 // loop_header
      %s19 = sphi 0, %s23
      %p20 = scmp.ge.s32.totalorder %s19, 6
      %s26 = sphi 0, %s38
      %s27 = sphi 0, %s34
      %s28 = sphi 0, %s26
      %s29 = sphi 0, %s27
      %s30 = sphi 0, %s28
      %s31 = sphi 0, %s29
      %s41 = sphi 0, %s43
      %s44 = sphi 0, %s41
      %s45 = sphi 0, %s44
      %s61 = sphi 0, %s45
      %s65 = sphi 0, %s65
      %s67 = sphi 0, %s65
      %s68 = sphi 0, %s67
      %s82 = sphi 0, %s68
      %s86 = sphi 0, %s86
      %s88 = sphi 0, %s86
      %s89 = sphi 0, %s88
      %s103 = sphi 0, %s89
      %s107 = sphi 0, %s107
      %s109 = sphi 0, %s107
      %s110 = sphi 0, %s109
      %s124 = sphi 0, %s110
      %s132 = sphi 0, %s134
      %s135 = sphi 0, %s132
      %s136 = sphi 0, %s135
      %s152 = sphi 0, %s136
      %s160 = sphi 0, %s162
      %s163 = sphi 0, %s160
      %s164 = sphi 0, %s163
      %s180 = sphi 0, %s164
    $region4: #{tpu_custom_call.1} parent=1 // loop_header_branch
      %22 = sbr.rel (%p20) target = $region8
    $region5: #{tpu_custom_call.1} parent=1 // loop_body
      %s24 = ssub.s32 %s19, 1
      %s25 = ssub.s32 %s19, 2
      %s32 = sadd.s32 1, %s27
      %p33 = scmp.ge.s32.totalorder %s32, 2
      %s34 = scalar_select %p33, 0, %s32
      %s35 = sadd.s32 1, %s26
      %s36 = scalar_select %p33, %s35, %s26
      %p37 = scmp.ge.s32.totalorder %s36, 2
      %s38 = scalar_select %p37, 0, %s36
      %s39 = ssub.s32 %s26, %s38
      %p40 = scmp.eq.s32.totalorder %s39, 0
      %s42 = sadd.s32 %s41, 1
      %s43 = scalar_select %p40, %s41, %s42
      %p46 = pneg %p40
      %p47 = scmp.eq.s32.totalorder %s19, 3
      %p48 = por %p46, %p47
      %p49 = scmp.ne.s32.totalorder %s41, %s44
      %p50 = scmp.eq.s32.totalorder %s19, 0
      %p51 = por %p49, %p50
      %p52 = scmp.ne.s32.totalorder %s41, %s44
      %p53 = scmp.eq.s32.totalorder %s24, 3
      %p54 = por %p52, %p53
      %p55 = scmp.ne.s32.totalorder %s44, %s45
      %p56 = scmp.eq.s32.totalorder %s24, 0
      %p57 = por %p55, %p56
      %p58 = scmp.ne.s32.totalorder %s44, %s45
      %p59 = scmp.eq.s32.totalorder %s25, 3
      %p60 = por %p58, %p59
      %p62 = scmp.ne.s32.totalorder %s45, %s61
      %p63 = scmp.eq.s32.totalorder %s25, 0
      %p64 = por %p62, %p63
      %s66 = sadd.s32 %s65, 1
      %p69 = scmp.eq.s32.totalorder %s19, 3
      %p70 = scmp.ne.s32.totalorder %s65, %s67
      %p71 = scmp.eq.s32.totalorder %s19, 0
      %p72 = por %p70, %p71
      %p73 = scmp.ne.s32.totalorder %s65, %s67
      %p74 = scmp.eq.s32.totalorder %s24, 3
      %p75 = por %p73, %p74
      %p76 = scmp.ne.s32.totalorder %s67, %s68
      %p77 = scmp.eq.s32.totalorder %s24, 0
      %p78 = por %p76, %p77
      %p79 = scmp.ne.s32.totalorder %s67, %s68
      %p80 = scmp.eq.s32.totalorder %s25, 3
      %p81 = por %p79, %p80
      %p83 = scmp.ne.s32.totalorder %s68, %s82
      %p84 = scmp.eq.s32.totalorder %s25, 0
      %p85 = por %p83, %p84
      %s87 = sadd.s32 %s86, 1
      %p90 = scmp.eq.s32.totalorder %s19, 3
      %p91 = scmp.ne.s32.totalorder %s86, %s88
      %p92 = scmp.eq.s32.totalorder %s19, 0
      %p93 = por %p91, %p92
      %p94 = scmp.ne.s32.totalorder %s86, %s88
      %p95 = scmp.eq.s32.totalorder %s24, 3
      %p96 = por %p94, %p95
      %p97 = scmp.ne.s32.totalorder %s88, %s89
      %p98 = scmp.eq.s32.totalorder %s24, 0
      %p99 = por %p97, %p98
      %p100 = scmp.ne.s32.totalorder %s88, %s89
      %p101 = scmp.eq.s32.totalorder %s25, 3
      %p102 = por %p100, %p101
      %p104 = scmp.ne.s32.totalorder %s89, %s103
      %p105 = scmp.eq.s32.totalorder %s25, 0
      %p106 = por %p104, %p105
      %s108 = sadd.s32 %s107, 1
      %p111 = scmp.eq.s32.totalorder %s19, 3
      %p112 = scmp.ne.s32.totalorder %s107, %s109
      %p113 = scmp.eq.s32.totalorder %s19, 0
      %p114 = por %p112, %p113
      %p115 = scmp.ne.s32.totalorder %s107, %s109
      %p116 = scmp.eq.s32.totalorder %s24, 3
      %p117 = por %p115, %p116
      %p118 = scmp.ne.s32.totalorder %s109, %s110
      %p119 = scmp.eq.s32.totalorder %s24, 0
      %p120 = por %p118, %p119
      %p121 = scmp.ne.s32.totalorder %s109, %s110
      %p122 = scmp.eq.s32.totalorder %s25, 3
      %p123 = por %p121, %p122
      %p125 = scmp.ne.s32.totalorder %s110, %s124
      %p126 = scmp.eq.s32.totalorder %s25, 0
      %p127 = por %p125, %p126
      %s128 = ssub.s32 %s26, %s38
      %s129 = ssub.s32 %s27, %s34
      %s130 = sor.u32 %s128, %s129
      %p131 = scmp.eq.s32.totalorder %s130, 0
      %s133 = sadd.s32 %s132, 1
      %s134 = scalar_select %p131, %s132, %s133
      %p137 = pneg %p131
      %p138 = scmp.eq.s32.totalorder %s19, 3
      %p139 = por %p137, %p138
      %p140 = scmp.ne.s32.totalorder %s132, %s135
      %p141 = scmp.eq.s32.totalorder %s19, 0
      %p142 = por %p140, %p141
      %p143 = scmp.ne.s32.totalorder %s132, %s135
      %p144 = scmp.eq.s32.totalorder %s24, 3
      %p145 = por %p143, %p144
      %p146 = scmp.ne.s32.totalorder %s135, %s136
      %p147 = scmp.eq.s32.totalorder %s24, 0
      %p148 = por %p146, %p147
      %p149 = scmp.ne.s32.totalorder %s135, %s136
      %p150 = scmp.eq.s32.totalorder %s25, 3
      %p151 = por %p149, %p150
      %p153 = scmp.ne.s32.totalorder %s136, %s152
      %p154 = scmp.eq.s32.totalorder %s25, 0
      %p155 = por %p153, %p154
      %s156 = ssub.s32 %s26, %s38
      %s157 = ssub.s32 %s27, %s34
      %s158 = sor.u32 %s156, %s157
      %p159 = scmp.eq.s32.totalorder %s158, 0
      %s161 = sadd.s32 %s160, 1
      %s162 = scalar_select %p159, %s160, %s161
      %p165 = pneg %p159
      %p166 = scmp.eq.s32.totalorder %s19, 3
      %p167 = por %p165, %p166
      %p168 = scmp.ne.s32.totalorder %s160, %s163
      %p169 = scmp.eq.s32.totalorder %s19, 0
      %p170 = por %p168, %p169
      %p171 = scmp.ne.s32.totalorder %s160, %s163
      %p172 = scmp.eq.s32.totalorder %s24, 3
      %p173 = por %p171, %p172
      %p174 = scmp.ne.s32.totalorder %s163, %s164
      %p175 = scmp.eq.s32.totalorder %s24, 0
      %p176 = por %p174, %p175
      %p177 = scmp.ne.s32.totalorder %s163, %s164
      %p178 = scmp.eq.s32.totalorder %s25, 3
      %p179 = por %p177, %p178
      %p181 = scmp.ne.s32.totalorder %s164, %s180
      %p182 = scmp.eq.s32.totalorder %s25, 0
      %p183 = por %p181, %p182
      %p184 = scmp.le.s32.totalorder 1, %s19
      %p185 = scmp.lt.s32.totalorder %s19, 5
      %p186 = pnand %p184, %p185
      %p187 = pneg %p186
      // Predicated region
      $region9: #{tpu_custom_call.1} parent=5 // pred_check
        _
      $region10: #{tpu_custom_call.1} parent=5 // pred_check_branch
        %189 = sbr.rel (%p186) target = $region12
      $region11: #{tpu_custom_call.1} parent=5 // pred_region
        %s190 = ssub.s32 %s19, 1
        // Predicated region
        $region13: #{tpu_custom_call.1} parent=11 // pred_check
          %p191 = pneg %p78
        $region14: #{tpu_custom_call.1} parent=11 // pred_check_branch
          %193 = sbr.rel (%p191) target = $region16
        $region15: #{tpu_custom_call.1} parent=11 // pred_region
          _
        $region16: #{tpu_custom_call.1} parent=11 // pred_fallthru
          _
        // Predicated region
        $region17: #{tpu_custom_call.1} parent=11 // pred_check
          %p194 = pneg %p99
        $region18: #{tpu_custom_call.1} parent=11 // pred_check_branch
          %196 = sbr.rel (%p194) target = $region20
        $region19: #{tpu_custom_call.1} parent=11 // pred_region
          _
        $region20: #{tpu_custom_call.1} parent=11 // pred_fallthru
          _
        // Predicated region
        $region21: #{tpu_custom_call.1} parent=11 // pred_check
          %p197 = pneg %p120
        $region22: #{tpu_custom_call.1} parent=11 // pred_check_branch
          %199 = sbr.rel (%p197) target = $region24
        $region23: #{tpu_custom_call.1} parent=11 // pred_region
          _
        $region24: #{tpu_custom_call.1} parent=11 // pred_fallthru
          _
      $region12: #{tpu_custom_call.1} parent=5 // pred_fallthru
        _
      %p200 = scmp.lt.s32.totalorder %s19, 4
      // Predicated region
      $region25: #{tpu_custom_call.1} parent=5 // pred_check
        %p201 = pneg %p200
      $region26: #{tpu_custom_call.1} parent=5 // pred_check_branch
        %203 = sbr.rel (%p201) target = $region28
      $region27: #{tpu_custom_call.1} parent=5 // pred_region
        // Predicated region
        $region29: #{tpu_custom_call.1} parent=27 // pred_check
          %p204 = pneg %p51
        $region30: #{tpu_custom_call.1} parent=27 // pred_check_branch
          %206 = sbr.rel (%p204) target = $region32
        $region31: #{tpu_custom_call.1} parent=27 // pred_region
          %p207 = scmp.lt.s32.totalorder %s26, 1
          %s208 = scalar_select %p207, %s26, 1
          %s209 = smul.addr %s208, 8
          %s210 = smul.addr %s209, 8
          %s211 = scalar_lea.vmem %s0, %s210
        $region32: #{tpu_custom_call.1} parent=27 // pred_fallthru
          _
      $region28: #{tpu_custom_call.1} parent=5 // pred_fallthru
        _
      %p212 = scmp.le.s32.totalorder 1, %s19
      %p213 = scmp.lt.s32.totalorder %s19, 5
      %p214 = pnand %p212, %p213
      %p215 = pneg %p214
      // Predicated region
      $region33: #{tpu_custom_call.1} parent=5 // pred_check
        _
      $region34: #{tpu_custom_call.1} parent=5 // pred_check_branch
        %217 = sbr.rel (%p214) target = $region36
      $region35: #{tpu_custom_call.1} parent=5 // pred_region
        %s218 = ssub.s32 %s19, 1
        %p219 = scmp.lt.s32.totalorder %s28, 1
        %s220 = scalar_select %p219, %s28, 1
        %s221 = smul.addr %s220, 8
        %s222 = smul.addr %s221, 8
        %s223 = scalar_lea.vmem %s0, %s222
        %p224 = pneg %p57
        %p225 = pneg %p54
        %p226 = pneg %p78
        %p227 = pneg %p75
        %p228 = pneg %p99
        %p229 = pneg %p96
        %p230 = pneg %p120
        %p231 = pneg %p117
        %p232 = pneg %p148
        %p233 = pneg %p145
        %s234 = sand.u32 %s135, 1
        %s235 = scalar_lea.sflag [#allocation6], %s234
        %s236 = sand.u32 %s135, 1
        %s237 = smul.addr %s236, 32
        %s238 = scalar_lea.vmem [#allocation5], %s237
        %p239 = pneg %p176
        %p240 = pneg %p173
        %s241 = sand.u32 %s163, 1
        %s242 = scalar_lea.sflag [#allocation8], %s241
        %s243 = sand.u32 %s163, 1
        %s244 = smul.addr %s243, 256
        %s245 = scalar_lea.vmem [#allocation7], %s244
        %p246 = scmp.lt.s32.totalorder %s28, 1
        %s247 = scalar_select %p246, %s28, 1
        %s248 = smul.addr %s247, 8
        %s249 = smul.addr %s248, 8
        %s250 = scalar_lea.vmem %s0, %s249
        %s251 = smul.u32 16, %s29
        %p252 = scmp.eq.s32.totalorder %s29, 0
        // Predicated region
        $region37: #{tpu_custom_call.1} parent=35 // pred_check
          %p253 = pneg %p252
        $region38: #{tpu_custom_call.1} parent=35 // pred_check_branch
          %255 = sbr.rel (%p253) target = $region40
        $region39: #{tpu_custom_call.1} parent=35 // pred_region
          %v256 = vld [vmem:[%s250] sm:$0xff]
          %v257 = vld [vmem:[%s250 + $0x8] sm:$0xff]
          %v258 = vld [vmem:[%s250 + $0x10] sm:$0xff]
          %v259 = vld [vmem:[%s250 + $0x18] sm:$0xff]
          %v260 = vld [vmem:[%s250 + $0x20] sm:$0xff]
          %v261 = vld [vmem:[%s250 + $0x28] sm:$0xff]
          %v262 = vld [vmem:[%s250 + $0x30] sm:$0xff]
          %v263 = vld [vmem:[%s250 + $0x38] sm:$0xff]
          %v264 = vld [vmem:[%s1] sm:$0xff]
          %v265 = vld [vmem:[%s1 + $0x8] sm:$0xff]
          %v266 = vld [vmem:[%s1 + $0x10] sm:$0xff]
          %v267 = vld [vmem:[%s1 + $0x18] sm:$0xff]
          %v268 = vld [vmem:[%s1 + $0x20] sm:$0xff]
          %v269 = vld [vmem:[%s1 + $0x28] sm:$0xff]
          %v270 = vld [vmem:[%s2] sm:$0xff]
          %v271 = vld [vmem:[%s2 + $0x8] sm:$0xff]
          %v272 = vld [vmem:[%s2 + $0x10] sm:$0xff]
          %v273 = vld [vmem:[%s2 + $0x18] sm:$0xff]
          %v274 = vld [vmem:[%s2 + $0x20] sm:$0xff]
          %v275 = vld [vmem:[%s2 + $0x28] sm:$0xff]
          %277 = vset.pattern.permute.xlu0 0
          %278 = vperm.xlu0 %277, %v270
          %v279 = vpop.permute.xlu0 %278
          %282 = vset.pattern.permute.xlu0 0
          %283 = vperm.xlu0 %282, %v271
          %v284 = vpop.permute.xlu0 %283
          %287 = vset.pattern.permute.xlu0 0
          %288 = vperm.xlu0 %287, %v272
          %v289 = vpop.permute.xlu0 %288
          %292 = vset.pattern.permute.xlu0 0
          %293 = vperm.xlu0 %292, %v273
          %v294 = vpop.permute.xlu0 %293
          %297 = vset.pattern.permute.xlu0 0
          %298 = vperm.xlu0 %297, %v274
          %v299 = vpop.permute.xlu0 %298
          %302 = vset.pattern.permute.xlu0 0
          %303 = vperm.xlu0 %302, %v275
          %v304 = vpop.permute.xlu0 %303
          %vm306 = vcmask 261120
          %v308 = vsel %vm306, %v264, 0
          %v311 = vsel %vm306, %v265, 0
          %v314 = vsel %vm306, %v266, 0
          %v317 = vsel %vm306, %v267, 0
          %v320 = vsel %vm306, %v268, 0
          %v323 = vsel %vm306, %v269, 0
          %325 = vmatpush.msra.mxu0 0.0
          %326 = vmatpush.msra.mxu0 0.0
          %327 = vmatpush.msra.mxu0 0.0
          %328 = vmatpush.msra.mxu0 0.0
          %329 = vmatpush.msra.mxu0 0.0
          %330 = vmatpush.msra.mxu0 0.0
          %331 = vmatpush.msra.mxu0 0.0
          %332 = vmatpush.msra.mxu0 0.0
          %333 = vmatpush.msra.mxu0 0.0
          %334 = vmatpush.msra.mxu0 0.0
          %335 = vmatpush.msra.mxu0 0.0
          %336 = vmatpush.msra.mxu0 0.0
          %337 = vmatpush.msra.mxu0 %v262
          %338 = vmatpush.msra.mxu0 %v260
          %339 = vmatpush.msra.mxu0 %v258
          %340 = vmatpush.msra.mxu0 %v256
          %341 = vmatmul.f32.gmra.mxu0 %v308
          %v342 = vpop.f32.mrf.mxu0
          %v343 = vadd.f32 %v279, %v342
          %344 = vmatmul.f32.gmra.mxu0 %v311
          %v345 = vpop.f32.mrf.mxu0
          %v346 = vadd.f32 %v284, %v345
          %347 = vmatmul.f32.gmra.mxu0 %v314
          %v348 = vpop.f32.mrf.mxu0
          %v349 = vadd.f32 %v289, %v348
          %350 = vmatmul.f32.gmra.mxu0 %v317
          %v351 = vpop.f32.mrf.mxu0
          %v352 = vadd.f32 %v294, %v351
          %353 = vmatmul.f32.gmra.mxu0 %v320
          %v354 = vpop.f32.mrf.mxu0
          %v355 = vadd.f32 %v299, %v354
          %356 = vmatmul.f32.gmra.mxu0 %v323
          %v357 = vpop.f32.mrf.mxu0
          %v358 = vadd.f32 %v304, %v357
          %359 = vdwg.mxu0
          %360 = vmatpush.msra.mxu0 0.0
          %361 = vmatpush.msra.mxu0 0.0
          %362 = vmatpush.msra.mxu0 0.0
          %363 = vmatpush.msra.mxu0 0.0
          %364 = vmatpush.msra.mxu0 0.0
          %365 = vmatpush.msra.mxu0 0.0
          %366 = vmatpush.msra.mxu0 0.0
          %367 = vmatpush.msra.mxu0 0.0
          %368 = vmatpush.msra.mxu0 0.0
          %369 = vmatpush.msra.mxu0 0.0
          %370 = vmatpush.msra.mxu0 0.0
          %371 = vmatpush.msra.mxu0 0.0
          %372 = vmatpush.msra.mxu0 %v263
          %373 = vmatpush.msra.mxu0 %v261
          %374 = vmatpush.msra.mxu0 %v259
          %375 = vmatpush.msra.mxu0 %v257
          %376 = vmatmul.f32.gmra.mxu0 %v308
          %v377 = vpop.f32.mrf.mxu0
          %v378 = vadd.f32 %v279, %v377
          %379 = vmatmul.f32.gmra.mxu0 %v311
          %v380 = vpop.f32.mrf.mxu0
          %v381 = vadd.f32 %v284, %v380
          %382 = vmatmul.f32.gmra.mxu0 %v314
          %v383 = vpop.f32.mrf.mxu0
          %v384 = vadd.f32 %v289, %v383
          %385 = vmatmul.f32.gmra.mxu0 %v317
          %v386 = vpop.f32.mrf.mxu0
          %v387 = vadd.f32 %v294, %v386
          %388 = vmatmul.f32.gmra.mxu0 %v320
          %v389 = vpop.f32.mrf.mxu0
          %v390 = vadd.f32 %v299, %v389
          %391 = vmatmul.f32.gmra.mxu0 %v323
          %v392 = vpop.f32.mrf.mxu0
          %v393 = vadd.f32 %v304, %v392
          %394 = vdwg.mxu0
          %395 = vst [vmem:[#allocation2] sm:$0xff] %v343
          %396 = vst [vmem:[#allocation2 + $0x8] sm:$0xff] %v378
          %397 = vst [vmem:[#allocation2 + $0x10] sm:$0xff] %v346
          %398 = vst [vmem:[#allocation2 + $0x18] sm:$0xff] %v381
          %399 = vst [vmem:[#allocation2 + $0x20] sm:$0xff] %v349
          %400 = vst [vmem:[#allocation2 + $0x28] sm:$0xff] %v384
          %401 = vst [vmem:[#allocation2 + $0x30] sm:$0xff] %v352
          %402 = vst [vmem:[#allocation2 + $0x38] sm:$0xff] %v387
          %403 = vst [vmem:[#allocation2 + $0x40] sm:$0xff] %v355
          %404 = vst [vmem:[#allocation2 + $0x48] sm:$0xff] %v390
          %405 = vst [vmem:[#allocation2 + $0x50] sm:$0xff] %v358
          %406 = vst [vmem:[#allocation2 + $0x58] sm:$0xff] %v393
          %407 = vxpose.xlu0.b32.start [1/16] %v343, 128
          %408 = vxpose.xlu0.b32.cont [2/16] 0.0, 128
          %409 = vxpose.xlu0.b32.cont [3/16] 0.0, 128
          %410 = vxpose.xlu0.b32.cont [4/16] 0.0, 128
          %411 = vxpose.xlu0.b32.cont [5/16] 0.0, 128
          %412 = vxpose.xlu0.b32.cont [6/16] 0.0, 128
          %413 = vxpose.xlu0.b32.cont [7/16] 0.0, 128
          %414 = vxpose.xlu0.b32.cont [8/16] 0.0, 128
          %415 = vxpose.xlu0.b32.cont [9/16] 0.0, 128
          %416 = vxpose.xlu0.b32.cont [10/16] 0.0, 128
          %417 = vxpose.xlu0.b32.cont [11/16] 0.0, 128
          %418 = vxpose.xlu0.b32.cont [12/16] 0.0, 128
          %419 = vxpose.xlu0.b32.cont [13/16] 0.0, 128
          %420 = vxpose.xlu0.b32.cont [14/16] 0.0, 128
          %421 = vxpose.xlu0.b32.cont [15/16] 0.0, 128
          %422 = vxpose.xlu0.b32.end [16/16] 0.0, 128
          %v423 = vpop.trf.xlu0
          %v424 = vpop.trf.xlu0
          %v425 = vpop.trf.xlu0
          %v426 = vpop.trf.xlu0
          %v427 = vpop.trf.xlu0
          %v428 = vpop.trf.xlu0
          %v429 = vpop.trf.xlu0
          %v430 = vpop.trf.xlu0
          %v431 = vpop.trf.xlu0
          %v432 = vpop.trf.xlu0
          %v433 = vpop.trf.xlu0
          %v434 = vpop.trf.xlu0
          %v435 = vpop.trf.xlu0
          %v436 = vpop.trf.xlu0
          %v437 = vpop.trf.xlu0
          %v438 = vpop.trf.xlu0
          %439 = vxpose.xlu0.b32.start [1/16] %v378, 128
          %440 = vxpose.xlu0.b32.cont [2/16] 0.0, 128
          %441 = vxpose.xlu0.b32.cont [3/16] 0.0, 128
          %442 = vxpose.xlu0.b32.cont [4/16] 0.0, 128
          %443 = vxpose.xlu0.b32.cont [5/16] 0.0, 128
          %444 = vxpose.xlu0.b32.cont [6/16] 0.0, 128
          %445 = vxpose.xlu0.b32.cont [7/16] 0.0, 128
          %446 = vxpose.xlu0.b32.cont [8/16] 0.0, 128
          %447 = vxpose.xlu0.b32.cont [9/16] 0.0, 128
          %448 = vxpose.xlu0.b32.cont [10/16] 0.0, 128
          %449 = vxpose.xlu0.b32.cont [11/16] 0.0, 128
          %450 = vxpose.xlu0.b32.cont [12/16] 0.0, 128
          %451 = vxpose.xlu0.b32.cont [13/16] 0.0, 128
          %452 = vxpose.xlu0.b32.cont [14/16] 0.0, 128
          %453 = vxpose.xlu0.b32.cont [15/16] 0.0, 128
          %454 = vxpose.xlu0.b32.end [16/16] 0.0, 128
          %v455 = vpop.trf.xlu0
          %v456 = vpop.trf.xlu0
          %v457 = vpop.trf.xlu0
          %v458 = vpop.trf.xlu0
          %v459 = vpop.trf.xlu0
          %v460 = vpop.trf.xlu0
          %v461 = vpop.trf.xlu0
          %v462 = vpop.trf.xlu0
          %v463 = vpop.trf.xlu0
          %v464 = vpop.trf.xlu0
          %v465 = vpop.trf.xlu0
          %v466 = vpop.trf.xlu0
          %v467 = vpop.trf.xlu0
          %v468 = vpop.trf.xlu0
          %v469 = vpop.trf.xlu0
          %v470 = vpop.trf.xlu0
          %vm471 = vcmask 64512
          %472 = vst.msk [vmem:[#allocation3] sm:$0xff] %vm471, %v423
          %473 = vst.msk [vmem:[#allocation3 + $0x8] sm:$0xff] %vm471, %v424
          %474 = vst.msk [vmem:[#allocation3 + $0x10] sm:$0xff] %vm471, %v425
          %475 = vst.msk [vmem:[#allocation3 + $0x18] sm:$0xff] %vm471, %v426
          %476 = vst.msk [vmem:[#allocation3 + $0x20] sm:$0xff] %vm471, %v427
          %477 = vst.msk [vmem:[#allocation3 + $0x28] sm:$0xff] %vm471, %v428
          %478 = vst.msk [vmem:[#allocation3 + $0x30] sm:$0xff] %vm471, %v429
          %479 = vst.msk [vmem:[#allocation3 + $0x38] sm:$0xff] %vm471, %v430
          %480 = vst.msk [vmem:[#allocation3 + $0x40] sm:$0xff] %vm471, %v431
          %481 = vst.msk [vmem:[#allocation3 + $0x48] sm:$0xff] %vm471, %v432
          %482 = vst.msk [vmem:[#allocation3 + $0x50] sm:$0xff] %vm471, %v433
          %483 = vst.msk [vmem:[#allocation3 + $0x58] sm:$0xff] %vm471, %v434
          %484 = vst.msk [vmem:[#allocation3 + $0x60] sm:$0xff] %vm471, %v435
          %485 = vst.msk [vmem:[#allocation3 + $0x68] sm:$0xff] %vm471, %v436
          %486 = vst.msk [vmem:[#allocation3 + $0x70] sm:$0xff] %vm471, %v437
          %487 = vst.msk [vmem:[#allocation3 + $0x78] sm:$0xff] %vm471, %v438
          %488 = vst.msk [vmem:[#allocation3 + $0x80] sm:$0xff] %vm471, %v455
          %489 = vst.msk [vmem:[#allocation3 + $0x88] sm:$0xff] %vm471, %v456
          %490 = vst.msk [vmem:[#allocation3 + $0x90] sm:$0xff] %vm471, %v457
          %491 = vst.msk [vmem:[#allocation3 + $0x98] sm:$0xff] %vm471, %v458
          %492 = vst.msk [vmem:[#allocation3 + $0xa0] sm:$0xff] %vm471, %v459
          %493 = vst.msk [vmem:[#allocation3 + $0xa8] sm:$0xff] %vm471, %v460
          %494 = vst.msk [vmem:[#allocation3 + $0xb0] sm:$0xff] %vm471, %v461
          %495 = vst.msk [vmem:[#allocation3 + $0xb8] sm:$0xff] %vm471, %v462
          %496 = vst.msk [vmem:[#allocation3 + $0xc0] sm:$0xff] %vm471, %v463
          %497 = vst.msk [vmem:[#allocation3 + $0xc8] sm:$0xff] %vm471, %v464
          %498 = vst.msk [vmem:[#allocation3 + $0xd0] sm:$0xff] %vm471, %v465
          %499 = vst.msk [vmem:[#allocation3 + $0xd8] sm:$0xff] %vm471, %v466
          %500 = vst.msk [vmem:[#allocation3 + $0xe0] sm:$0xff] %vm471, %v467
          %501 = vst.msk [vmem:[#allocation3 + $0xe8] sm:$0xff] %vm471, %v468
          %502 = vst.msk [vmem:[#allocation3 + $0xf0] sm:$0xff] %vm471, %v469
          %503 = vst.msk [vmem:[#allocation3 + $0xf8] sm:$0xff] %vm471, %v470
        $region40: #{tpu_custom_call.1} parent=35 // pred_fallthru
          _
        %s504 = smul.u32 %s29, 128
        %v505 = vld [vmem:[#allocation2 + $0x10] sm:$0xff]
        %v506 = vld [vmem:[#allocation2 + $0x18] sm:$0xff]
        %v507 = vld [vmem:[#allocation2 + $0x20] sm:$0xff]
        %v508 = vld [vmem:[#allocation2 + $0x28] sm:$0xff]
        %v509 = vld [vmem:[#allocation2 + $0x30] sm:$0xff]
        %v510 = vld [vmem:[#allocation2 + $0x38] sm:$0xff]
        %v511 = vld [vmem:[#allocation2 + $0x40] sm:$0xff]
        %v512 = vld [vmem:[#allocation2 + $0x48] sm:$0xff]
        %v513 = vld [vmem:[#allocation2 + $0x50] sm:$0xff]
        %v514 = vld [vmem:[#allocation2 + $0x58] sm:$0xff]
        %s515 = scalar_lea.vmem [#allocation3], %s504
        %v516 = vld [vmem:[%s515] sm:$0xff]
        %v517 = vld [vmem:[%s515 + $0x8] sm:$0xff]
        %v518 = vld [vmem:[%s515 + $0x10] sm:$0xff]
        %v519 = vld [vmem:[%s515 + $0x18] sm:$0xff]
        %v520 = vld [vmem:[%s515 + $0x20] sm:$0xff]
        %v521 = vld [vmem:[%s515 + $0x28] sm:$0xff]
        %v522 = vld [vmem:[%s515 + $0x30] sm:$0xff]
        %v523 = vld [vmem:[%s515 + $0x38] sm:$0xff]
        %v524 = vld [vmem:[%s515 + $0x40] sm:$0xff]
        %v525 = vld [vmem:[%s515 + $0x48] sm:$0xff]
        %v526 = vld [vmem:[%s515 + $0x50] sm:$0xff]
        %v527 = vld [vmem:[%s515 + $0x58] sm:$0xff]
        %v528 = vld [vmem:[%s515 + $0x60] sm:$0xff]
        %v529 = vld [vmem:[%s515 + $0x68] sm:$0xff]
        %v530 = vld [vmem:[%s515 + $0x70] sm:$0xff]
        %v531 = vld [vmem:[%s515 + $0x78] sm:$0xff]
        %vm532 = vcmask 64512
        %v534 = vsel %vm532, %v516, 0
        %v537 = vsel %vm532, %v517, 0
        %v540 = vsel %vm532, %v518, 0
        %v543 = vsel %vm532, %v519, 0
        %v546 = vsel %vm532, %v520, 0
        %v549 = vsel %vm532, %v521, 0
        %v552 = vsel %vm532, %v522, 0
        %v555 = vsel %vm532, %v523, 0
        %v558 = vsel %vm532, %v524, 0
        %v561 = vsel %vm532, %v525, 0
        %v564 = vsel %vm532, %v526, 0
        %v567 = vsel %vm532, %v527, 0
        %v570 = vsel %vm532, %v528, 0
        %v573 = vsel %vm532, %v529, 0
        %v576 = vsel %vm532, %v530, 0
        %v579 = vsel %vm532, %v531, 0
        %581 = vmatpush.msra.mxu0 0.0
        %582 = vmatpush.msra.mxu0 0.0
        %583 = vmatpush.msra.mxu0 0.0
        %584 = vmatpush.msra.mxu0 0.0
        %585 = vmatpush.msra.mxu0 0.0
        %586 = vmatpush.msra.mxu0 0.0
        %587 = vmatpush.msra.mxu0 0.0
        %588 = vmatpush.msra.mxu0 0.0
        %589 = vmatpush.msra.mxu0 0.0
        %590 = vmatpush.msra.mxu0 0.0
        %591 = vmatpush.msra.mxu0 0.0
        %592 = vmatpush.msra.mxu0 0.0
        %593 = vmatpush.msra.mxu0 0.0
        %594 = vmatpush.msra.mxu0 0.0
        %595 = vmatpush.msra.mxu0 0.0
        %596 = vmatpush.msra.mxu0 %v505
        %597 = vmatmul.f32.gmra.mxu0 %v534
        %v598 = vpop.f32.mrf.mxu0
        %v599 = vadd.f32 0.0, %v598
        %600 = vmatmul.f32.gmra.mxu0 %v537
        %v601 = vpop.f32.mrf.mxu0
        %v602 = vadd.f32 0.0, %v601
        %603 = vmatmul.f32.gmra.mxu0 %v540
        %v604 = vpop.f32.mrf.mxu0
        %v605 = vadd.f32 0.0, %v604
        %606 = vmatmul.f32.gmra.mxu0 %v543
        %v607 = vpop.f32.mrf.mxu0
        %v608 = vadd.f32 0.0, %v607
        %609 = vmatmul.f32.gmra.mxu0 %v546
        %v610 = vpop.f32.mrf.mxu0
        %v611 = vadd.f32 0.0, %v610
        %612 = vmatmul.f32.gmra.mxu0 %v549
        %v613 = vpop.f32.mrf.mxu0
        %v614 = vadd.f32 0.0, %v613
        %615 = vmatmul.f32.gmra.mxu0 %v552
        %v616 = vpop.f32.mrf.mxu0
        %v617 = vadd.f32 0.0, %v616
        %618 = vmatmul.f32.gmra.mxu0 %v555
        %v619 = vpop.f32.mrf.mxu0
        %v620 = vadd.f32 0.0, %v619
        %621 = vmatmul.f32.gmra.mxu0 %v558
        %v622 = vpop.f32.mrf.mxu0
        %v623 = vadd.f32 0.0, %v622
        %624 = vmatmul.f32.gmra.mxu0 %v561
        %v625 = vpop.f32.mrf.mxu0
        %v626 = vadd.f32 0.0, %v625
        %627 = vmatmul.f32.gmra.mxu0 %v564
        %v628 = vpop.f32.mrf.mxu0
        %v629 = vadd.f32 0.0, %v628
        %630 = vmatmul.f32.gmra.mxu0 %v567
        %v631 = vpop.f32.mrf.mxu0
        %v632 = vadd.f32 0.0, %v631
        %633 = vmatmul.f32.gmra.mxu0 %v570
        %v634 = vpop.f32.mrf.mxu0
        %v635 = vadd.f32 0.0, %v634
        %636 = vmatmul.f32.gmra.mxu0 %v573
        %v637 = vpop.f32.mrf.mxu0
        %v638 = vadd.f32 0.0, %v637
        %639 = vmatmul.f32.gmra.mxu0 %v576
        %v640 = vpop.f32.mrf.mxu0
        %v641 = vadd.f32 0.0, %v640
        %642 = vmatmul.f32.gmra.mxu0 %v579
        %v643 = vpop.f32.mrf.mxu0
        %v644 = vadd.f32 0.0, %v643
        %645 = vdwg.mxu0
        %646 = vmatpush.msra.mxu0 0.0
        %647 = vmatpush.msra.mxu0 0.0
        %648 = vmatpush.msra.mxu0 0.0
        %649 = vmatpush.msra.mxu0 0.0
        %650 = vmatpush.msra.mxu0 0.0
        %651 = vmatpush.msra.mxu0 0.0
        %652 = vmatpush.msra.mxu0 0.0
        %653 = vmatpush.msra.mxu0 0.0
        %654 = vmatpush.msra.mxu0 0.0
        %655 = vmatpush.msra.mxu0 0.0
        %656 = vmatpush.msra.mxu0 0.0
        %657 = vmatpush.msra.mxu0 0.0
        %658 = vmatpush.msra.mxu0 0.0
        %659 = vmatpush.msra.mxu0 0.0
        %660 = vmatpush.msra.mxu0 0.0
        %661 = vmatpush.msra.mxu0 %v506
        %662 = vmatmul.f32.gmra.mxu0 %v534
        %v663 = vpop.f32.mrf.mxu0
        %v664 = vadd.f32 0.0, %v663
        %665 = vmatmul.f32.gmra.mxu0 %v537
        %v666 = vpop.f32.mrf.mxu0
        %v667 = vadd.f32 0.0, %v666
        %668 = vmatmul.f32.gmra.mxu0 %v540
        %v669 = vpop.f32.mrf.mxu0
        %v670 = vadd.f32 0.0, %v669
        %671 = vmatmul.f32.gmra.mxu0 %v543
        %v672 = vpop.f32.mrf.mxu0
        %v673 = vadd.f32 0.0, %v672
        %674 = vmatmul.f32.gmra.mxu0 %v546
        %v675 = vpop.f32.mrf.mxu0
        %v676 = vadd.f32 0.0, %v675
        %677 = vmatmul.f32.gmra.mxu0 %v549
        %v678 = vpop.f32.mrf.mxu0
        %v679 = vadd.f32 0.0, %v678
        %680 = vmatmul.f32.gmra.mxu0 %v552
        %v681 = vpop.f32.mrf.mxu0
        %v682 = vadd.f32 0.0, %v681
        %683 = vmatmul.f32.gmra.mxu0 %v555
        %v684 = vpop.f32.mrf.mxu0
        %v685 = vadd.f32 0.0, %v684
        %686 = vmatmul.f32.gmra.mxu0 %v558
        %v687 = vpop.f32.mrf.mxu0
        %v688 = vadd.f32 0.0, %v687
        %689 = vmatmul.f32.gmra.mxu0 %v561
        %v690 = vpop.f32.mrf.mxu0
        %v691 = vadd.f32 0.0, %v690
        %692 = vmatmul.f32.gmra.mxu0 %v564
        %v693 = vpop.f32.mrf.mxu0
        %v694 = vadd.f32 0.0, %v693
        %695 = vmatmul.f32.gmra.mxu0 %v567
        %v696 = vpop.f32.mrf.mxu0
        %v697 = vadd.f32 0.0, %v696
        %698 = vmatmul.f32.gmra.mxu0 %v570
        %v699 = vpop.f32.mrf.mxu0
        %v700 = vadd.f32 0.0, %v699
        %701 = vmatmul.f32.gmra.mxu0 %v573
        %v702 = vpop.f32.mrf.mxu0
        %v703 = vadd.f32 0.0, %v702
        %704 = vmatmul.f32.gmra.mxu0 %v576
        %v705 = vpop.f32.mrf.mxu0
        %v706 = vadd.f32 0.0, %v705
        %707 = vmatmul.f32.gmra.mxu0 %v579
        %v708 = vpop.f32.mrf.mxu0
        %v709 = vadd.f32 0.0, %v708
        %710 = vdwg.mxu0
        %v711 = vmax.f32 %v599, %v664
        %712 = vmax.xlane.f32.xlu0 %v711
        %v713 = vpop.xlane.xlu0 %712
        %v714 = vmax.f32 %v602, %v667
        %715 = vmax.xlane.f32.xlu0 %v714
        %v716 = vpop.xlane.xlu0 %715
        %v717 = vmax.f32 %v605, %v670
        %718 = vmax.xlane.f32.xlu0 %v717
        %v719 = vpop.xlane.xlu0 %718
        %v720 = vmax.f32 %v608, %v673
        %721 = vmax.xlane.f32.xlu0 %v720
        %v722 = vpop.xlane.xlu0 %721
        %v723 = vmax.f32 %v611, %v676
        %724 = vmax.xlane.f32.xlu0 %v723
        %v725 = vpop.xlane.xlu0 %724
        %v726 = vmax.f32 %v614, %v679
        %727 = vmax.xlane.f32.xlu0 %v726
        %v728 = vpop.xlane.xlu0 %727
        %v729 = vmax.f32 %v617, %v682
        %730 = vmax.xlane.f32.xlu0 %v729
        %v731 = vpop.xlane.xlu0 %730
        %v732 = vmax.f32 %v620, %v685
        %733 = vmax.xlane.f32.xlu0 %v732
        %v734 = vpop.xlane.xlu0 %733
        %v735 = vmax.f32 %v623, %v688
        %736 = vmax.xlane.f32.xlu0 %v735
        %v737 = vpop.xlane.xlu0 %736
        %v738 = vmax.f32 %v626, %v691
        %739 = vmax.xlane.f32.xlu0 %v738
        %v740 = vpop.xlane.xlu0 %739
        %v741 = vmax.f32 %v629, %v694
        %742 = vmax.xlane.f32.xlu0 %v741
        %v743 = vpop.xlane.xlu0 %742
        %v744 = vmax.f32 %v632, %v697
        %745 = vmax.xlane.f32.xlu0 %v744
        %v746 = vpop.xlane.xlu0 %745
        %v747 = vmax.f32 %v635, %v700
        %748 = vmax.xlane.f32.xlu0 %v747
        %v749 = vpop.xlane.xlu0 %748
        %v750 = vmax.f32 %v638, %v703
        %751 = vmax.xlane.f32.xlu0 %v750
        %v752 = vpop.xlane.xlu0 %751
        %v753 = vmax.f32 %v641, %v706
        %754 = vmax.xlane.f32.xlu0 %v753
        %v755 = vpop.xlane.xlu0 %754
        %v756 = vmax.f32 %v644, %v709
        %757 = vmax.xlane.f32.xlu0 %v756
        %v758 = vpop.xlane.xlu0 %757
        %v759 = vsub.f32 %v599, %v713
        %v760 = vsub.f32 %v664, %v713
        %v761 = vsub.f32 %v602, %v716
        %v762 = vsub.f32 %v667, %v716
        %v763 = vsub.f32 %v605, %v719
        %v764 = vsub.f32 %v670, %v719
        %v765 = vsub.f32 %v608, %v722
        %v766 = vsub.f32 %v673, %v722
        %v767 = vsub.f32 %v611, %v725
        %v768 = vsub.f32 %v676, %v725
        %v769 = vsub.f32 %v614, %v728
        %v770 = vsub.f32 %v679, %v728
        %v771 = vsub.f32 %v617, %v731
        %v772 = vsub.f32 %v682, %v731
        %v773 = vsub.f32 %v620, %v734
        %v774 = vsub.f32 %v685, %v734
        %v775 = vsub.f32 %v623, %v737
        %v776 = vsub.f32 %v688, %v737
        %v777 = vsub.f32 %v626, %v740
        %v778 = vsub.f32 %v691, %v740
        %v779 = vsub.f32 %v629, %v743
        %v780 = vsub.f32 %v694, %v743
        %v781 = vsub.f32 %v632, %v746
        %v782 = vsub.f32 %v697, %v746
        %v783 = vsub.f32 %v635, %v749
        %v784 = vsub.f32 %v700, %v749
        %v785 = vsub.f32 %v638, %v752
        %v786 = vsub.f32 %v703, %v752
        %v787 = vsub.f32 %v641, %v755
        %v788 = vsub.f32 %v706, %v755
        %v789 = vsub.f32 %v644, %v758
        %v790 = vsub.f32 %v709, %v758
        %v791 = vmul.f32 %v759, 1.442695
        %v792 = vpow.pop %v791
        %v793 = vmul.f32 %v760, 1.442695
        %v794 = vpow.pop %v793
        %v795 = vmul.f32 %v761, 1.442695
        %v796 = vpow.pop %v795
        %v797 = vmul.f32 %v762, 1.442695
        %v798 = vpow.pop %v797
        %v799 = vmul.f32 %v763, 1.442695
        %v800 = vpow.pop %v799
        %v801 = vmul.f32 %v764, 1.442695
        %v802 = vpow.pop %v801
        %v803 = vmul.f32 %v765, 1.442695
        %v804 = vpow.pop %v803
        %v805 = vmul.f32 %v766, 1.442695
        %v806 = vpow.pop %v805
        %v807 = vmul.f32 %v767, 1.442695
        %v808 = vpow.pop %v807
        %v809 = vmul.f32 %v768, 1.442695
        %v810 = vpow.pop %v809
        %v811 = vmul.f32 %v769, 1.442695
        %v812 = vpow.pop %v811
        %v813 = vmul.f32 %v770, 1.442695
        %v814 = vpow.pop %v813
        %v815 = vmul.f32 %v771, 1.442695
        %v816 = vpow.pop %v815
        %v817 = vmul.f32 %v772, 1.442695
        %v818 = vpow.pop %v817
        %v819 = vmul.f32 %v773, 1.442695
        %v820 = vpow.pop %v819
        %v821 = vmul.f32 %v774, 1.442695
        %v822 = vpow.pop %v821
        %v823 = vmul.f32 %v775, 1.442695
        %v824 = vpow.pop %v823
        %v825 = vmul.f32 %v776, 1.442695
        %v826 = vpow.pop %v825
        %v827 = vmul.f32 %v777, 1.442695
        %v828 = vpow.pop %v827
        %v829 = vmul.f32 %v778, 1.442695
        %v830 = vpow.pop %v829
        %v831 = vmul.f32 %v779, 1.442695
        %v832 = vpow.pop %v831
        %v833 = vmul.f32 %v780, 1.442695
        %v834 = vpow.pop %v833
        %v835 = vmul.f32 %v781, 1.442695
        %v836 = vpow.pop %v835
        %v837 = vmul.f32 %v782, 1.442695
        %v838 = vpow.pop %v837
        %v839 = vmul.f32 %v783, 1.442695
        %v840 = vpow.pop %v839
        %v841 = vmul.f32 %v784, 1.442695
        %v842 = vpow.pop %v841
        %v843 = vmul.f32 %v785, 1.442695
        %v844 = vpow.pop %v843
        %v845 = vmul.f32 %v786, 1.442695
        %v846 = vpow.pop %v845
        %v847 = vmul.f32 %v787, 1.442695
        %v848 = vpow.pop %v847
        %v849 = vmul.f32 %v788, 1.442695
        %v850 = vpow.pop %v849
        %v851 = vmul.f32 %v789, 1.442695
        %v852 = vpow.pop %v851
        %v853 = vmul.f32 %v790, 1.442695
        %v854 = vpow.pop %v853
        %v855 = vadd.f32 %v792, %v794
        %856 = vadd.xlane.f32.xlu0 %v855
        %v857 = vpop.xlane.xlu0 %856
        %v858 = vadd.f32 %v796, %v798
        %859 = vadd.xlane.f32.xlu0 %v858
        %v860 = vpop.xlane.xlu0 %859
        %v861 = vadd.f32 %v800, %v802
        %862 = vadd.xlane.f32.xlu0 %v861
        %v863 = vpop.xlane.xlu0 %862
        %v864 = vadd.f32 %v804, %v806
        %865 = vadd.xlane.f32.xlu0 %v864
        %v866 = vpop.xlane.xlu0 %865
        %v867 = vadd.f32 %v808, %v810
        %868 = vadd.xlane.f32.xlu0 %v867
        %v869 = vpop.xlane.xlu0 %868
        %v870 = vadd.f32 %v812, %v814
        %871 = vadd.xlane.f32.xlu0 %v870
        %v872 = vpop.xlane.xlu0 %871
        %v873 = vadd.f32 %v816, %v818
        %874 = vadd.xlane.f32.xlu0 %v873
        %v875 = vpop.xlane.xlu0 %874
        %v876 = vadd.f32 %v820, %v822
        %877 = vadd.xlane.f32.xlu0 %v876
        %v878 = vpop.xlane.xlu0 %877
        %v879 = vadd.f32 %v824, %v826
        %880 = vadd.xlane.f32.xlu0 %v879
        %v881 = vpop.xlane.xlu0 %880
        %v882 = vadd.f32 %v828, %v830
        %883 = vadd.xlane.f32.xlu0 %v882
        %v884 = vpop.xlane.xlu0 %883
        %v885 = vadd.f32 %v832, %v834
        %886 = vadd.xlane.f32.xlu0 %v885
        %v887 = vpop.xlane.xlu0 %886
        %v888 = vadd.f32 %v836, %v838
        %889 = vadd.xlane.f32.xlu0 %v888
        %v890 = vpop.xlane.xlu0 %889
        %v891 = vadd.f32 %v840, %v842
        %892 = vadd.xlane.f32.xlu0 %v891
        %v893 = vpop.xlane.xlu0 %892
        %v894 = vadd.f32 %v844, %v846
        %895 = vadd.xlane.f32.xlu0 %v894
        %v896 = vpop.xlane.xlu0 %895
        %v897 = vadd.f32 %v848, %v850
        %898 = vadd.xlane.f32.xlu0 %v897
        %v899 = vpop.xlane.xlu0 %898
        %v900 = vadd.f32 %v852, %v854
        %901 = vadd.xlane.f32.xlu0 %v900
        %v902 = vpop.xlane.xlu0 %901
        %v903 = vrcp.pop %v857
        %v904 = vrcp.pop %v860
        %v905 = vrcp.pop %v863
        %v906 = vrcp.pop %v866
        %v907 = vrcp.pop %v869
        %v908 = vrcp.pop %v872
        %v909 = vrcp.pop %v875
        %v910 = vrcp.pop %v878
        %v911 = vrcp.pop %v881
        %v912 = vrcp.pop %v884
        %v913 = vrcp.pop %v887
        %v914 = vrcp.pop %v890
        %v915 = vrcp.pop %v893
        %v916 = vrcp.pop %v896
        %v917 = vrcp.pop %v899
        %v918 = vrcp.pop %v902
        %v919 = vmul.f32 %v792, %v903
        %v920 = vmul.f32 %v794, %v903
        %v921 = vmul.f32 %v796, %v904
        %v922 = vmul.f32 %v798, %v904
        %v923 = vmul.f32 %v800, %v905
        %v924 = vmul.f32 %v802, %v905
        %v925 = vmul.f32 %v804, %v906
        %v926 = vmul.f32 %v806, %v906
        %v927 = vmul.f32 %v808, %v907
        %v928 = vmul.f32 %v810, %v907
        %v929 = vmul.f32 %v812, %v908
        %v930 = vmul.f32 %v814, %v908
        %v931 = vmul.f32 %v816, %v909
        %v932 = vmul.f32 %v818, %v909
        %v933 = vmul.f32 %v820, %v910
        %v934 = vmul.f32 %v822, %v910
        %v935 = vmul.f32 %v824, %v911
        %v936 = vmul.f32 %v826, %v911
        %v937 = vmul.f32 %v828, %v912
        %v938 = vmul.f32 %v830, %v912
        %v939 = vmul.f32 %v832, %v913
        %v940 = vmul.f32 %v834, %v913
        %v941 = vmul.f32 %v836, %v914
        %v942 = vmul.f32 %v838, %v914
        %v943 = vmul.f32 %v840, %v915
        %v944 = vmul.f32 %v842, %v915
        %v945 = vmul.f32 %v844, %v916
        %v946 = vmul.f32 %v846, %v916
        %v947 = vmul.f32 %v848, %v917
        %v948 = vmul.f32 %v850, %v917
        %v949 = vmul.f32 %v852, %v918
        %v950 = vmul.f32 %v854, %v918
        %951 = vst [vmem:[%s245] sm:$0xff] %v919
        %952 = vst [vmem:[%s245 + $0x8] sm:$0xff] %v920
        %953 = vst [vmem:[%s245 + $0x10] sm:$0xff] %v921
        %954 = vst [vmem:[%s245 + $0x18] sm:$0xff] %v922
        %955 = vst [vmem:[%s245 + $0x20] sm:$0xff] %v923
        %956 = vst [vmem:[%s245 + $0x28] sm:$0xff] %v924
        %957 = vst [vmem:[%s245 + $0x30] sm:$0xff] %v925
        %958 = vst [vmem:[%s245 + $0x38] sm:$0xff] %v926
        %959 = vst [vmem:[%s245 + $0x40] sm:$0xff] %v927
        %960 = vst [vmem:[%s245 + $0x48] sm:$0xff] %v928
        %961 = vst [vmem:[%s245 + $0x50] sm:$0xff] %v929
        %962 = vst [vmem:[%s245 + $0x58] sm:$0xff] %v930
        %963 = vst [vmem:[%s245 + $0x60] sm:$0xff] %v931
        %964 = vst [vmem:[%s245 + $0x68] sm:$0xff] %v932
        %965 = vst [vmem:[%s245 + $0x70] sm:$0xff] %v933
        %966 = vst [vmem:[%s245 + $0x78] sm:$0xff] %v934
        %967 = vst [vmem:[%s245 + $0x80] sm:$0xff] %v935
        %968 = vst [vmem:[%s245 + $0x88] sm:$0xff] %v936
        %969 = vst [vmem:[%s245 + $0x90] sm:$0xff] %v937
        %970 = vst [vmem:[%s245 + $0x98] sm:$0xff] %v938
        %971 = vst [vmem:[%s245 + $0xa0] sm:$0xff] %v939
        %972 = vst [vmem:[%s245 + $0xa8] sm:$0xff] %v940
        %973 = vst [vmem:[%s245 + $0xb0] sm:$0xff] %v941
        %974 = vst [vmem:[%s245 + $0xb8] sm:$0xff] %v942
        %975 = vst [vmem:[%s245 + $0xc0] sm:$0xff] %v943
        %976 = vst [vmem:[%s245 + $0xc8] sm:$0xff] %v944
        %977 = vst [vmem:[%s245 + $0xd0] sm:$0xff] %v945
        %978 = vst [vmem:[%s245 + $0xd8] sm:$0xff] %v946
        %979 = vst [vmem:[%s245 + $0xe0] sm:$0xff] %v947
        %980 = vst [vmem:[%s245 + $0xe8] sm:$0xff] %v948
        %981 = vst [vmem:[%s245 + $0xf0] sm:$0xff] %v949
        %982 = vst [vmem:[%s245 + $0xf8] sm:$0xff] %v950
        %983 = vmatpush.xpose.msra.mxu0 %v949
        %984 = vmatpush.xpose.msra.mxu0 %v947
        %985 = vmatpush.xpose.msra.mxu0 %v945
        %986 = vmatpush.xpose.msra.mxu0 %v943
        %987 = vmatpush.xpose.msra.mxu0 %v941
        %988 = vmatpush.xpose.msra.mxu0 %v939
        %989 = vmatpush.xpose.msra.mxu0 %v937
        %990 = vmatpush.xpose.msra.mxu0 %v935
        %991 = vmatpush.xpose.msra.mxu0 %v933
        %992 = vmatpush.xpose.msra.mxu0 %v931
        %993 = vmatpush.xpose.msra.mxu0 %v929
        %994 = vmatpush.xpose.msra.mxu0 %v927
        %995 = vmatpush.xpose.msra.mxu0 %v925
        %996 = vmatpush.xpose.msra.mxu0 %v923
        %997 = vmatpush.xpose.msra.mxu0 %v921
        %998 = vmatpush.xpose.msra.mxu0 %v919
        %999 = vmatmul.f32.gmra.mxu0 %v507
        %v1000 = vpop.f32.mrf.mxu0
        %v1001 = vadd.f32 0.0, %v1000
        %1002 = vmatmul.f32.gmra.mxu0 %v509
        %v1003 = vpop.f32.mrf.mxu0
        %v1004 = vadd.f32 0.0, %v1003
        %1005 = vmatmul.f32.gmra.mxu0 %v511
        %v1006 = vpop.f32.mrf.mxu0
        %v1007 = vadd.f32 0.0, %v1006
        %1008 = vmatmul.f32.gmra.mxu0 %v513
        %v1009 = vpop.f32.mrf.mxu0
        %v1010 = vadd.f32 0.0, %v1009
        %1011 = vdwg.mxu0
        %1012 = vmatpush.xpose.msra.mxu0 %v950
        %1013 = vmatpush.xpose.msra.mxu0 %v948
        %1014 = vmatpush.xpose.msra.mxu0 %v946
        %1015 = vmatpush.xpose.msra.mxu0 %v944
        %1016 = vmatpush.xpose.msra.mxu0 %v942
        %1017 = vmatpush.xpose.msra.mxu0 %v940
        %1018 = vmatpush.xpose.msra.mxu0 %v938
        %1019 = vmatpush.xpose.msra.mxu0 %v936
        %1020 = vmatpush.xpose.msra.mxu0 %v934
        %1021 = vmatpush.xpose.msra.mxu0 %v932
        %1022 = vmatpush.xpose.msra.mxu0 %v930
        %1023 = vmatpush.xpose.msra.mxu0 %v928
        %1024 = vmatpush.xpose.msra.mxu0 %v926
        %1025 = vmatpush.xpose.msra.mxu0 %v924
        %1026 = vmatpush.xpose.msra.mxu0 %v922
        %1027 = vmatpush.xpose.msra.mxu0 %v920
        %1028 = vmatmul.f32.gmra.mxu0 %v508
        %v1029 = vpop.f32.mrf.mxu0
        %v1030 = vadd.f32 %v1001, %v1029
        %1031 = vmatmul.f32.gmra.mxu0 %v510
        %v1032 = vpop.f32.mrf.mxu0
        %v1033 = vadd.f32 %v1004, %v1032
        %1034 = vmatmul.f32.gmra.mxu0 %v512
        %v1035 = vpop.f32.mrf.mxu0
        %v1036 = vadd.f32 %v1007, %v1035
        %1037 = vmatmul.f32.gmra.mxu0 %v514
        %v1038 = vpop.f32.mrf.mxu0
        %v1039 = vadd.f32 %v1010, %v1038
        %1040 = vdwg.mxu0
        %s1041 = sshra.s32 %s504, 7
        %s1042 = sand.u32 %s504, 127
        %s1043 = smul.addr %s1041, 8
        %s1044 = scalar_lea.vmem %s250, %s1043
        %v1045 = vld [vmem:[%s1044] sm:$0xff]
        %v1046 = vld [vmem:[%s1044 + $0x10] sm:$0xff]
        %v1047 = vld [vmem:[%s1044 + $0x20] sm:$0xff]
        %v1048 = vld [vmem:[%s1044 + $0x30] sm:$0xff]
        %s1049 = sld [smem:[#allocation4]]
        %v1050 = vstv %s1049
        %v1051 = vmul.f32 %v1050, %v1030
        %v1052 = vmul.f32 %v1050, %v1033
        %v1053 = vmul.f32 %v1050, %v1036
        %v1054 = vmul.f32 %v1050, %v1039
        %v1055 = vadd.f32 %v1051, %v1045
        %v1056 = vadd.f32 %v1052, %v1046
        %v1057 = vadd.f32 %v1053, %v1047
        %v1058 = vadd.f32 %v1054, %v1048
        %1059 = vst [vmem:[%s238] sm:$0xff] %v1055
        %1060 = vst [vmem:[%s238 + $0x8] sm:$0xff] %v1056
        %1061 = vst [vmem:[%s238 + $0x10] sm:$0xff] %v1057
        %1062 = vst [vmem:[%s238 + $0x18] sm:$0xff] %v1058
        %s1063 = sand.u32 %s135, 1
        %s1064 = scalar_lea.sflag [#allocation6], %s1063
        %s1065 = sand.u32 %s135, 1
        %s1066 = smul.addr %s1065, 32
        %s1067 = scalar_lea.vmem [#allocation5], %s1066
        %s1068 = sand.u32 %s163, 1
        %s1069 = scalar_lea.sflag [#allocation8], %s1068
        %s1070 = sand.u32 %s163, 1
        %s1071 = smul.addr %s1070, 256
        %s1072 = scalar_lea.vmem [#allocation7], %s1071
        // Predicated region
        $region41: #{tpu_custom_call.1} parent=35 // pred_check
          %p1073 = pneg %p145
        $region42: #{tpu_custom_call.1} parent=35 // pred_check_branch
          %1075 = sbr.rel (%p1073) target = $region44
        $region43: #{tpu_custom_call.1} parent=35 // pred_region
          %1077 = vsyncadd %s1064, 0
          %s1078 = smul.addr %s28, 8
          %s1079 = sadd.s32 %s29, %s1078
          %s1080 = smul.addr %s1079, 8
          %s1081 = scalar_lea.hbm %s4, %s1080
          %s1082 = sshll.u32 %s1067, 4
          %s1083 = int_to_ptr.vmem [resolvable:$true] %s1082
          %s1084 = sshll.u32 %s1081, 4
          %s1085 = int_to_ptr.hbm [resolvable:$true] %s1084
          %1090 = dma.vmem_to_hbm [thread:$0]  %s1083, 512, %s1085, %s1064, 128, 256, 8
        $region44: #{tpu_custom_call.1} parent=35 // pred_fallthru
          _
        // Predicated region
        $region45: #{tpu_custom_call.1} parent=35 // pred_check
          %p1091 = pneg %p173
        $region46: #{tpu_custom_call.1} parent=35 // pred_check_branch
          %1093 = sbr.rel (%p1091) target = $region48
        $region47: #{tpu_custom_call.1} parent=35 // pred_region
          %s1094 = smul.u32 16, %s29
          %1096 = vsyncadd %s1069, 0
          %s1097 = smul.addr %s1094, 2
          %s1098 = smul.addr %s28, 64
          %s1099 = sadd.s32 %s1097, %s1098
          %s1100 = smul.addr %s1099, 8
          %s1101 = scalar_lea.hbm %s5, %s1100
          %s1102 = sshll.u32 %s1072, 4
          %s1103 = int_to_ptr.vmem [resolvable:$true] %s1102
          %s1104 = sshll.u32 %s1101, 4
          %s1105 = int_to_ptr.hbm [resolvable:$true] %s1104
          %1110 = dma.vmem_to_hbm [thread:$0]  %s1103, 4096, %s1105, %s1069, 256, 256, 16
        $region48: #{tpu_custom_call.1} parent=35 // pred_fallthru
          _
      $region36: #{tpu_custom_call.1} parent=5 // pred_fallthru
        _
      %p1111 = scmp.le.s32.totalorder 2, %s19
      // Predicated region
      $region49: #{tpu_custom_call.1} parent=5 // pred_check
        %p1112 = pneg %p1111
      $region50: #{tpu_custom_call.1} parent=5 // pred_check_branch
        %1114 = sbr.rel (%p1112) target = $region52
      $region51: #{tpu_custom_call.1} parent=5 // pred_region
        %s1115 = ssub.s32 %s19, 2
        // Predicated region
        $region53: #{tpu_custom_call.1} parent=51 // pred_check
          %p1116 = pneg %p151
        $region54: #{tpu_custom_call.1} parent=51 // pred_check_branch
          %1118 = sbr.rel (%p1116) target = $region56
        $region55: #{tpu_custom_call.1} parent=51 // pred_region
          %s1119 = sand.u32 %s136, 1
          %s1120 = scalar_lea.sflag [#allocation6], %s1119
          %s1121 = sand.u32 %s136, 1
          %s1122 = smul.addr %s1121, 32
          %s1123 = scalar_lea.vmem [#allocation5], %s1122
          %1125 = dma.done %s1120, 512
        $region56: #{tpu_custom_call.1} parent=51 // pred_fallthru
          _
        // Predicated region
        $region57: #{tpu_custom_call.1} parent=51 // pred_check
          %p1126 = pneg %p179
        $region58: #{tpu_custom_call.1} parent=51 // pred_check_branch
          %1128 = sbr.rel (%p1126) target = $region60
        $region59: #{tpu_custom_call.1} parent=51 // pred_region
          %s1129 = sand.u32 %s164, 1
          %s1130 = scalar_lea.sflag [#allocation8], %s1129
          %s1131 = sand.u32 %s164, 1
          %s1132 = smul.addr %s1131, 256
          %s1133 = scalar_lea.vmem [#allocation7], %s1132
          %1135 = dma.done %s1130, 4096
        $region60: #{tpu_custom_call.1} parent=51 // pred_fallthru
          _
      $region52: #{tpu_custom_call.1} parent=5 // pred_fallthru
        _
    $region6: #{tpu_custom_call.1} parent=1 // loop_footer
      %s23 = sadd.s32 1, %s19
    $region7: #{tpu_custom_call.1} parent=1 // loop_footer_branch
      %18 = sbr.rel target = $region3
    $region8: #{tpu_custom_call.1} parent=1 // loop_exit
      _
    %1136 = vsyncpa [#allocation6], 1
    %s1137 = scalar_lea.sflag [#allocation6], 1
    %1138 = vsyncpa %s1137, 1
    %1139 = vsyncpa [#allocation8], 1
    %s1140 = scalar_lea.sflag [#allocation8], 1
    %1141 = vsyncpa %s1140, 1

</llo_original>
